<compile_context>
chip_gen: v5e
topology: v5e:2x2
jax: 0.10.0
libtpu: 0.0.40
codegen_flags: <defaults>
</compile_context>

<pallas_src>
import numpy as np
import jax
import jax.numpy as jnp
from jax import lax
from jax.experimental import pallas as pl
from jax.experimental.pallas import tpu as pltpu

# Conv hyper-parameters from the PyTorch module __init__
IN_C, OUT_C = 1, 3
KH, KW = 7, 12
SH, SW = 3, 7
K = KH * KW          # 84 (contraction dim)
C_SUB = 8            # out-channels padded to one sublane group


def _conv_tanh_kernel(w_ref, b_ref, pt_ref, o_ref):
    # w: (8, 84), b: (8, 1), patches^T tile: (84, TM), out^T tile: (8, TM)
    acc = jnp.dot(w_ref[...], pt_ref[...], preferred_element_type=jnp.float32)
    o_ref[...] = jnp.tanh(acc + b_ref[...])


def conv2d_tanh(x, weight, bias, *, tm_max=4096, target_grid_steps=2):
    """x: (N, 1, H, W) f32, weight: (3, 1, 7, 12) f32, bias: (3,) f32.
    Returns (N, 3, OH, OW) f32 matching torch.tanh(nn.Conv2d(...)(x))."""
    N, C, H, W = x.shape
    assert C == IN_C
    OH = (H - KH) // SH + 1
    OW = (W - KW) // SW + 1
    M = N * OH * OW

    # --- im2col, built directly in transposed (K, M) layout:
    #     row k = kh*KW + kw  (matches weight.reshape(3, 84) ordering)
    #     col m = n*OH*OW + oh*OW + ow
    xs = x[:, 0]  # (N, H, W)
    rows = []
    for kh in range(KH):
        for kw in range(KW):
            sl = lax.slice(
                xs,
                (0, kh, kw),
                (N, kh + (OH - 1) * SH + 1, kw + (OW - 1) * SW + 1),
                (1, SH, SW),
            )  # (N, OH, OW)
            rows.append(sl.reshape(-1))
    patches_t = jnp.stack(rows, axis=0).astype(jnp.float32)   # (K, M) un-padded

    # --- tile M (lane dim): cover M in <= target_grid_steps steps (>=2 steps
    #     keeps both v7x TensorCores busy), capped by tm_max; TM is a multiple
    #     of 128 lanes.  No explicit pad of patches: the last block is ragged.
    tm = -(-M // target_grid_steps)            # cdiv(M, steps)
    tm = -(-tm // 128) * 128                   # round up to 128 lanes
    TM = int(max(128, min(tm_max, tm)))
    grid = (pl.cdiv(M, TM),)

    # Weights / bias padded to 8 sublanes (rows 3..7 are zeros, sliced off).
    w_p = jnp.zeros((C_SUB, K), jnp.float32).at[:OUT_C].set(
        weight.reshape(OUT_C, K).astype(jnp.float32))
    b_p = jnp.zeros((C_SUB, 1), jnp.float32).at[:OUT_C, 0].set(
        bias.astype(jnp.float32))

    cost = pl.CostEstimate(
        flops=2 * M * K * C_SUB,
        transcendentals=C_SUB * M,
        bytes_accessed=4 * (K * M + C_SUB * M + C_SUB * K + C_SUB),
    )

    out_t = pl.pallas_call(
        _conv_tanh_kernel,
        out_shape=jax.ShapeDtypeStruct((C_SUB, M), jnp.float32),
        grid=grid,
        in_specs=[
            pl.BlockSpec((C_SUB, K), lambda i: (0, 0)),   # weight (resident)
            pl.BlockSpec((C_SUB, 1), lambda i: (0, 0)),   # bias   (resident)
            pl.BlockSpec((K, TM),    lambda i: (0, i)),   # patches^T tile
        ],
        out_specs=pl.BlockSpec((C_SUB, TM), lambda i: (0, i)),
        compiler_params=pltpu.CompilerParams(
            dimension_semantics=("parallel",)),
        cost_estimate=cost,
    )(w_p, b_p, patches_t)

    if N == 1:
        # Column order is (oh, ow) -> NCHW is a pure reshape, no transpose op.
        return out_t[:OUT_C].reshape(1, OUT_C, OH, OW)
    out = out_t[:OUT_C].reshape(OUT_C, N, OH, OW)
    return jnp.transpose(out, (1, 0, 2, 3))               # NCHW


def _reference(x, weight, bias):
    # Pure-JAX reference (NCHW conv + tanh) for correctness check.
    y = lax.conv_general_dilated(
        x, weight, window_strides=(SH, SW), padding="VALID",
        dimension_numbers=("NCHW", "OIHW", "NCHW"),
        precision=lax.Precision.HIGHEST)
    return jnp.tanh(y + bias.reshape(1, OUT_C, 1, 1))


if __name__ == "__main__":
    key = jax.random.PRNGKey(0)
    kx, kw, kb = jax.random.split(key, 3)

    # Shapes from the module spec: x = randn(1, 1, 142, 546)
    #   -> OH = 46, OW = 77, M = 3542 (exercises the 2-step ragged grid).
    N, H, W = 1, 142, 546
    x = jax.random.normal(kx, (N, IN_C, H, W), dtype=jnp.float32)

    # Deterministic parameter init (PyTorch-like uniform fan-in bound).
    fan_in = IN_C * KH * KW
    bound = 1.0 / np.sqrt(fan_in)
    weight = jax.random.uniform(kw, (OUT_C, IN_C, KH, KW),
                                minval=-bound, maxval=bound, dtype=jnp.float32)
    bias = jax.random.uniform(kb, (OUT_C,),
                              minval=-bound, maxval=bound, dtype=jnp.float32)

    out = conv2d_tanh(x, weight, bias)
    out = jax.block_until_ready(out)

    ref = jax.block_until_ready(_reference(x, weight, bias))
    assert out.shape == ref.shape, (out.shape, ref.shape)
    np.testing.assert_allclose(np.asarray(out), np.asarray(ref),
                               rtol=1e-5, atol=1e-5)

    print("KERNEL_OK")
</pallas_src>

<mosaic_0001>
module attributes {stable_mosaic.version = 11 : i64} {
  func.func @_conv_tanh_kernel(%arg0: i32, %arg1: memref<8x84xf32, #tpu.memory_space<vmem>>, %arg2: memref<8x1xf32, #tpu.memory_space<vmem>>, %arg3: memref<84x1792xf32, #tpu.memory_space<vmem>>, %arg4: memref<8x1792xf32, #tpu.memory_space<vmem>>) attributes {dimension_semantics = [#tpu.dimension_semantics<parallel>], iteration_bounds = array<i64: 2>, scalar_prefetch = 0 : i64, scratch_operands = 0 : i64, tpu.core_type = #tpu.core_type<tc>, window_params = [{pipeline_mode = #tpu.pipeline_mode<synchronous>, transform_indices = @transform_0, window_bounds = array<i64: 8, 84>}, {pipeline_mode = #tpu.pipeline_mode<synchronous>, transform_indices = @transform_1, window_bounds = array<i64: 8, 1>}, {transform_indices = @transform_2, window_bounds = array<i64: 84, 1792>}, {transform_indices = @transform_3, window_bounds = array<i64: 8, 1792>}]} {
    %c0 = arith.constant 0 : index
    %c0_0 = arith.constant 0 : index
    %0 = vector.load %arg1[%c0, %c0_0] : memref<8x84xf32, #tpu.memory_space<vmem>>, vector<8x84xf32>
    %c0_1 = arith.constant 0 : index
    %c0_2 = arith.constant 0 : index
    %1 = vector.load %arg3[%c0_1, %c0_2] : memref<84x1792xf32, #tpu.memory_space<vmem>>, vector<84x1792xf32>
    %cst = arith.constant dense<0.000000e+00> : vector<8x1792xf32>
    %2 = tpu.matmul %0, %1, %cst {dimension_numbers = #tpu.dot_dimension_numbers<[1], [0], [0], [1], [0, 0, 1, 1], [], []>} : vector<8x84xf32>, vector<84x1792xf32>, vector<8x1792xf32> -> vector<8x1792xf32>
    %c0_3 = arith.constant 0 : index
    %c0_4 = arith.constant 0 : index
    %3 = vector.load %arg2[%c0_3, %c0_4] : memref<8x1xf32, #tpu.memory_space<vmem>>, vector<8x1xf32>
    %4 = vector.broadcast %3 : vector<8x1xf32> to vector<8x1792xf32>
    %5 = arith.addf %2, %4 : vector<8x1792xf32>
    %6 = math.tanh %5 : vector<8x1792xf32>
    %c0_5 = arith.constant 0 : index
    %c0_6 = arith.constant 0 : index
    %7 = vector.load %arg4[%c0_5, %c0_6] : memref<8x1792xf32, #tpu.memory_space<vmem>>, vector<8x1792xf32>
    tpu.vector_store %arg4[%c0_5, %c0_6], %6 {strides = array<i32>} : memref<8x1792xf32, #tpu.memory_space<vmem>>, vector<8x1792xf32>,
    return
  }
  func.func @transform_0(%arg0: i32) -> (i32, i32) {
    %c0_i32 = arith.constant 0 : i32
    %c0_i32_0 = arith.constant 0 : i32
    %c0_i32_1 = arith.constant 0 : i32
    return %c0_i32, %c0_i32_0 : i32, i32
  }
  func.func @transform_1(%arg0: i32) -> (i32, i32) {
    %c0_i32 = arith.constant 0 : i32
    %c0_i32_0 = arith.constant 0 : i32
    %c0_i32_1 = arith.constant 0 : i32
    return %c0_i32, %c0_i32_0 : i32, i32
  }
  func.func @transform_2(%arg0: i32) -> (i32, i32) {
    %c0_i32 = arith.constant 0 : i32
    %c0_i32_0 = arith.constant 0 : i32
    return %c0_i32, %arg0 : i32, i32
  }
  func.func @transform_3(%arg0: i32) -> (i32, i32) {
    %c0_i32 = arith.constant 0 : i32
    %c0_i32_0 = arith.constant 0 : i32
    return %c0_i32, %arg0 : i32, i32
  }
}

</mosaic_0001>

<llo_original>
// kernel: tpu_custom_call.1
$region0: #{tpu_custom_call.1}
  #allocation0 [shape = 'u32[]', space=smem, size = 0x4, offset = 0x4, fixed_abs, tag = 'smem constant byte address 0x4 - core index']
  #allocation1 [shape = 'u32[72,128]{1,0:T(1,128)}', space=vmem, size = 0x9000, scoped, tag = 'internal scratch']
  %s0 = inlined_call_operand.hbm [shape: f32[8,84], index: 0, kind: input, shape index: {}]
  %s1 = inlined_call_operand.vmem [shape: f32[8,1], index: 1, kind: input, shape index: {}]
  %s2 = inlined_call_operand.hbm [shape: f32[84,3542], index: 2, kind: input, shape index: {}]
  %s3 = inlined_call_operand.hbm [shape: f32[8,3542], index: 3, kind: output, shape index: {}]
  %s4 = sld [smem:[#allocation0]]
  $region53: #{tpu_custom_call.1} parent=0
    _
  %s6 = ssub.s32 1, %s4
  %s7 = scalar_select 0, %s6, %s4
  $region1: #{tpu_custom_call.1} parent=0
    #allocation2 [shape = 'u8[4096]{0}', space=vmem, size = 0x1000, scoped, tag = 'input window, operand 0, single buffered']
    #allocation3 [shape = 's32[2]{0}', space=sflag, size = 0x8, scoped, tag = 'scoped memory for tpu_custom_call.1']
    #allocation4 [shape = 's32[2]{0}', space=sflag, size = 0x8, scoped, tag = 'scoped memory for tpu_custom_call.1']
    #allocation5 [shape = 'u8[1261568]{0}', space=vmem, size = 0x134000, scoped, tag = 'input window, operand 2']
    #allocation6 [shape = 's32[2]{0}', space=sflag, size = 0x8, scoped, tag = 'scoped memory for tpu_custom_call.1']
    #allocation7 [shape = 'u8[114688]{0}', space=vmem, size = 0x1c000, scoped, tag = 'output window, operand 0']
    %8 = vsyncpa [#allocation3], 0
    %9 = vsyncpa [#allocation6], 0
    %s10 = scalar_lea.sflag [#allocation6], 1
    %11 = vsyncpa %s10, 0
    %12 = vsyncpa [#allocation4], 0
    %s13 = scalar_lea.sflag [#allocation4], 1
    %14 = vsyncpa %s13, 0
    loop: start=0, step=1, limit=4
    $region2: #{tpu_custom_call.1} parent=1 // loop_pre_header
      _
    $region3: #{tpu_custom_call.1} parent=1 // loop_header
      %s16 = sphi 0, %s20
      %p17 = scmp.ge.s32.totalorder %s16, 4
      %s24 = sphi 0, %s24
      %s26 = sphi 0, %s24
      %s27 = sphi 0, %s26
      %s41 = sphi 0, %s27
      %s45 = sphi 0, %s45
      %s47 = sphi 0, %s45
      %s48 = sphi 0, %s47
      %s62 = sphi 0, %s48
      %s68 = sphi 0, %s70
      %s71 = sphi 0, %s68
      %s72 = sphi 0, %s71
      %s88 = sphi 0, %s72
      %s94 = sphi 0, %s96
      %s97 = sphi 0, %s94
      %s98 = sphi 0, %s97
      %s114 = sphi 0, %s98
    $region4: #{tpu_custom_call.1} parent=1 // loop_header_branch
      %19 = sbr.rel (%p17) target = $region8
    $region5: #{tpu_custom_call.1} parent=1 // loop_body
      %s21 = ssub.s32 %s16, 1
      %s22 = ssub.s32 %s16, 2
      %s23 = sadd.s32 %s16, 1
      %s25 = sadd.s32 %s24, 1
      %p28 = scmp.eq.s32.totalorder %s16, 1
      %p29 = scmp.ne.s32.totalorder %s24, %s26
      %p30 = scmp.eq.s32.totalorder %s16, 0
      %p31 = por %p29, %p30
      %p32 = scmp.ne.s32.totalorder %s24, %s26
      %p33 = scmp.eq.s32.totalorder %s21, 1
      %p34 = por %p32, %p33
      %p35 = scmp.ne.s32.totalorder %s26, %s27
      %p36 = scmp.eq.s32.totalorder %s21, 0
      %p37 = por %p35, %p36
      %p38 = scmp.ne.s32.totalorder %s26, %s27
      %p39 = scmp.eq.s32.totalorder %s22, 1
      %p40 = por %p38, %p39
      %p42 = scmp.ne.s32.totalorder %s27, %s41
      %p43 = scmp.eq.s32.totalorder %s22, 0
      %p44 = por %p42, %p43
      %s46 = sadd.s32 %s45, 1
      %p49 = scmp.eq.s32.totalorder %s16, 1
      %p50 = scmp.ne.s32.totalorder %s45, %s47
      %p51 = scmp.eq.s32.totalorder %s16, 0
      %p52 = por %p50, %p51
      %p53 = scmp.ne.s32.totalorder %s45, %s47
      %p54 = scmp.eq.s32.totalorder %s21, 1
      %p55 = por %p53, %p54
      %p56 = scmp.ne.s32.totalorder %s47, %s48
      %p57 = scmp.eq.s32.totalorder %s21, 0
      %p58 = por %p56, %p57
      %p59 = scmp.ne.s32.totalorder %s47, %s48
      %p60 = scmp.eq.s32.totalorder %s22, 1
      %p61 = por %p59, %p60
      %p63 = scmp.ne.s32.totalorder %s48, %s62
      %p64 = scmp.eq.s32.totalorder %s22, 0
      %p65 = por %p63, %p64
      %s66 = ssub.s32 %s16, %s23
      %p67 = scmp.eq.s32.totalorder %s66, 0
      %s69 = sadd.s32 %s68, 1
      %s70 = scalar_select %p67, %s68, %s69
      %p73 = pneg %p67
      %p74 = scmp.eq.s32.totalorder %s16, 1
      %p75 = por %p73, %p74
      %p76 = scmp.ne.s32.totalorder %s68, %s71
      %p77 = scmp.eq.s32.totalorder %s16, 0
      %p78 = por %p76, %p77
      %p79 = scmp.ne.s32.totalorder %s68, %s71
      %p80 = scmp.eq.s32.totalorder %s21, 1
      %p81 = por %p79, %p80
      %p82 = scmp.ne.s32.totalorder %s71, %s72
      %p83 = scmp.eq.s32.totalorder %s21, 0
      %p84 = por %p82, %p83
      %p85 = scmp.ne.s32.totalorder %s71, %s72
      %p86 = scmp.eq.s32.totalorder %s22, 1
      %p87 = por %p85, %p86
      %p89 = scmp.ne.s32.totalorder %s72, %s88
      %p90 = scmp.eq.s32.totalorder %s22, 0
      %p91 = por %p89, %p90
      %s92 = ssub.s32 %s16, %s23
      %p93 = scmp.eq.s32.totalorder %s92, 0
      %s95 = sadd.s32 %s94, 1
      %s96 = scalar_select %p93, %s94, %s95
      %p99 = pneg %p93
      %p100 = scmp.eq.s32.totalorder %s16, 1
      %p101 = por %p99, %p100
      %p102 = scmp.ne.s32.totalorder %s94, %s97
      %p103 = scmp.eq.s32.totalorder %s16, 0
      %p104 = por %p102, %p103
      %p105 = scmp.ne.s32.totalorder %s94, %s97
      %p106 = scmp.eq.s32.totalorder %s21, 1
      %p107 = por %p105, %p106
      %p108 = scmp.ne.s32.totalorder %s97, %s98
      %p109 = scmp.eq.s32.totalorder %s21, 0
      %p110 = por %p108, %p109
      %p111 = scmp.ne.s32.totalorder %s97, %s98
      %p112 = scmp.eq.s32.totalorder %s22, 1
      %p113 = por %p111, %p112
      %p115 = scmp.ne.s32.totalorder %s98, %s114
      %p116 = scmp.eq.s32.totalorder %s22, 0
      %p117 = por %p115, %p116
      %p118 = scmp.le.s32.totalorder 1, %s16
      %p119 = scmp.lt.s32.totalorder %s16, 3
      %p120 = pnand %p118, %p119
      %p121 = pneg %p120
      // Predicated region
      $region9: #{tpu_custom_call.1} parent=5 // pred_check
        _
      $region10: #{tpu_custom_call.1} parent=5 // pred_check_branch
        %123 = sbr.rel (%p120) target = $region12
      $region11: #{tpu_custom_call.1} parent=5 // pred_region
        %s124 = ssub.s32 %s16, 1
        // Predicated region
        $region13: #{tpu_custom_call.1} parent=11 // pred_check
          %p125 = pneg %p37
        $region14: #{tpu_custom_call.1} parent=11 // pred_check_branch
          %127 = sbr.rel (%p125) target = $region16
        $region15: #{tpu_custom_call.1} parent=11 // pred_region
          %129 = vsyncadd [#allocation3], 0
          %s131 = sshll.u32 %s0, 4
          %s132 = int_to_ptr.hbm [resolvable:$true] %s131
          %s133 = sshll.u32 [#allocation2], 4
          %s134 = int_to_ptr.vmem [resolvable:$true] %s133
          %136 = dma.hbm_to_vmem [thread:$0]  %s132, 128, %s134, [#allocation3]
        $region16: #{tpu_custom_call.1} parent=11 // pred_fallthru
          _
        // Predicated region
        $region17: #{tpu_custom_call.1} parent=11 // pred_check
          %p137 = pneg %p58
        $region18: #{tpu_custom_call.1} parent=11 // pred_check_branch
          %139 = sbr.rel (%p137) target = $region20
        $region19: #{tpu_custom_call.1} parent=11 // pred_region
          _
        $region20: #{tpu_custom_call.1} parent=11 // pred_fallthru
          _
      $region12: #{tpu_custom_call.1} parent=5 // pred_fallthru
        _
      %p140 = scmp.lt.s32.totalorder %s16, 2
      // Predicated region
      $region21: #{tpu_custom_call.1} parent=5 // pred_check
        %p141 = pneg %p140
      $region22: #{tpu_custom_call.1} parent=5 // pred_check_branch
        %143 = sbr.rel (%p141) target = $region24
      $region23: #{tpu_custom_call.1} parent=5 // pred_region
        // Predicated region
        $region25: #{tpu_custom_call.1} parent=23 // pred_check
          %p144 = pneg %p78
        $region26: #{tpu_custom_call.1} parent=23 // pred_check_branch
          %146 = sbr.rel (%p144) target = $region28
        $region27: #{tpu_custom_call.1} parent=23 // pred_region
          %s147 = sand.u32 %s68, 1
          %s148 = scalar_lea.sflag [#allocation6], %s147
          %s149 = sand.u32 %s68, 1
          %s150 = smul.addr %s149, 1232
          %s151 = scalar_lea.vmem [#allocation5], %s150
          %s152 = smul.u32 14, %s16
          %154 = vsyncadd %s148, 0
          %s155 = smul.addr %s152, 8
          %s156 = scalar_lea.hbm %s2, %s155
          %s157 = sshll.u32 %s156, 4
          %s158 = int_to_ptr.hbm [resolvable:$true] %s157
          %s159 = sshll.u32 %s151, 4
          %s160 = int_to_ptr.vmem [resolvable:$true] %s159
          %165 = dma.hbm_to_vmem [thread:$0]  %s158, 19712, %s160, %s148, 3584, 1792, 112
        $region28: #{tpu_custom_call.1} parent=23 // pred_fallthru
          _
      $region24: #{tpu_custom_call.1} parent=5 // pred_fallthru
        _
      %p166 = scmp.le.s32.totalorder 1, %s16
      %p167 = scmp.lt.s32.totalorder %s16, 3
      %p168 = pnand %p166, %p167
      %p169 = pneg %p168
      // Predicated region
      $region29: #{tpu_custom_call.1} parent=5 // pred_check
        _
      $region30: #{tpu_custom_call.1} parent=5 // pred_check_branch
        %171 = sbr.rel (%p168) target = $region32
      $region31: #{tpu_custom_call.1} parent=5 // pred_region
        %s172 = ssub.s32 %s16, 1
        // Predicated region
        $region33: #{tpu_custom_call.1} parent=31 // pred_check
          %p173 = pneg %p37
        $region34: #{tpu_custom_call.1} parent=31 // pred_check_branch
          %175 = sbr.rel (%p173) target = $region36
        $region35: #{tpu_custom_call.1} parent=31 // pred_region
          %177 = dma.done [#allocation3], 128
        $region36: #{tpu_custom_call.1} parent=31 // pred_fallthru
          _
        %s178 = sand.u32 %s71, 1
        %s179 = scalar_lea.sflag [#allocation6], %s178
        %s180 = sand.u32 %s71, 1
        %s181 = smul.addr %s180, 1232
        %s182 = scalar_lea.vmem [#allocation5], %s181
        // Predicated region
        $region37: #{tpu_custom_call.1} parent=31 // pred_check
          %p183 = pneg %p84
        $region38: #{tpu_custom_call.1} parent=31 // pred_check_branch
          %185 = sbr.rel (%p183) target = $region40
        $region39: #{tpu_custom_call.1} parent=31 // pred_region
          %187 = dma.done %s179, 19712
        $region40: #{tpu_custom_call.1} parent=31 // pred_fallthru
          _
        %p188 = pneg %p37
        %p189 = pneg %p34
        %p190 = pneg %p58
        %p191 = pneg %p55
        %s192 = sand.u32 %s71, 1
        %s193 = scalar_lea.sflag [#allocation6], %s192
        %s194 = sand.u32 %s71, 1
        %s195 = smul.addr %s194, 1232
        %s196 = scalar_lea.vmem [#allocation5], %s195
        %p197 = pneg %p84
        %p198 = pneg %p81
        %p199 = pneg %p110
        %p200 = pneg %p107
        %s201 = sand.u32 %s97, 1
        %s202 = scalar_lea.sflag [#allocation4], %s201
        %s203 = sand.u32 %s97, 1
        %s204 = smul.addr %s203, 112
        %s205 = scalar_lea.vmem [#allocation7], %s204
        %s206 = smul.u32 14, %s21
        %s207 = smul.u32 14, %s21
        %v208 = vld [vmem:[#allocation2] sm:$0xff]
        %v209 = vld [vmem:[%s182] sm:$0xff]
        %v210 = vld [vmem:[%s182 + $0x8] sm:$0xff]
        %v211 = vld [vmem:[%s182 + $0x10] sm:$0xff]
        %v212 = vld [vmem:[%s182 + $0x18] sm:$0xff]
        %v213 = vld [vmem:[%s182 + $0x20] sm:$0xff]
        %v214 = vld [vmem:[%s182 + $0x28] sm:$0xff]
        %v215 = vld [vmem:[%s182 + $0x30] sm:$0xff]
        %v216 = vld [vmem:[%s182 + $0x38] sm:$0xff]
        %v217 = vld [vmem:[%s182 + $0x40] sm:$0xff]
        %v218 = vld [vmem:[%s182 + $0x48] sm:$0xff]
        %v219 = vld [vmem:[%s182 + $0x50] sm:$0xff]
        %v220 = vld [vmem:[%s182 + $0x58] sm:$0xff]
        %v221 = vld [vmem:[%s182 + $0x60] sm:$0xff]
        %v222 = vld [vmem:[%s182 + $0x68] sm:$0xff]
        %v223 = vld [vmem:[%s182 + $0x70] sm:$0xff]
        %v224 = vld [vmem:[%s182 + $0x78] sm:$0xff]
        %v225 = vld [vmem:[%s182 + $0x80] sm:$0xff]
        %v226 = vld [vmem:[%s182 + $0x88] sm:$0xff]
        %v227 = vld [vmem:[%s182 + $0x90] sm:$0xff]
        %v228 = vld [vmem:[%s182 + $0x98] sm:$0xff]
        %v229 = vld [vmem:[%s182 + $0xa0] sm:$0xff]
        %v230 = vld [vmem:[%s182 + $0xa8] sm:$0xff]
        %v231 = vld [vmem:[%s182 + $0xb0] sm:$0xff]
        %v232 = vld [vmem:[%s182 + $0xb8] sm:$0xff]
        %v233 = vld [vmem:[%s182 + $0xc0] sm:$0xff]
        %v234 = vld [vmem:[%s182 + $0xc8] sm:$0xff]
        %v235 = vld [vmem:[%s182 + $0xd0] sm:$0xff]
        %v236 = vld [vmem:[%s182 + $0xd8] sm:$0xff]
        %v237 = vld [vmem:[%s182 + $0xe0] sm:$0xff]
        %v238 = vld [vmem:[%s182 + $0xe8] sm:$0xff]
        %v239 = vld [vmem:[%s182 + $0xf0] sm:$0xff]
        %v240 = vld [vmem:[%s182 + $0xf8] sm:$0xff]
        %v241 = vld [vmem:[%s182 + $0x100] sm:$0xff]
        %v242 = vld [vmem:[%s182 + $0x108] sm:$0xff]
        %v243 = vld [vmem:[%s182 + $0x110] sm:$0xff]
        %v244 = vld [vmem:[%s182 + $0x118] sm:$0xff]
        %v245 = vld [vmem:[%s182 + $0x120] sm:$0xff]
        %v246 = vld [vmem:[%s182 + $0x128] sm:$0xff]
        %v247 = vld [vmem:[%s182 + $0x130] sm:$0xff]
        %v248 = vld [vmem:[%s182 + $0x138] sm:$0xff]
        %v249 = vld [vmem:[%s182 + $0x140] sm:$0xff]
        %v250 = vld [vmem:[%s182 + $0x148] sm:$0xff]
        %v251 = vld [vmem:[%s182 + $0x150] sm:$0xff]
        %v252 = vld [vmem:[%s182 + $0x158] sm:$0xff]
        %v253 = vld [vmem:[%s182 + $0x160] sm:$0xff]
        %v254 = vld [vmem:[%s182 + $0x168] sm:$0xff]
        %v255 = vld [vmem:[%s182 + $0x170] sm:$0xff]
        %v256 = vld [vmem:[%s182 + $0x178] sm:$0xff]
        %v257 = vld [vmem:[%s182 + $0x180] sm:$0xff]
        %v258 = vld [vmem:[%s182 + $0x188] sm:$0xff]
        %v259 = vld [vmem:[%s182 + $0x190] sm:$0xff]
        %v260 = vld [vmem:[%s182 + $0x198] sm:$0xff]
        %v261 = vld [vmem:[%s182 + $0x1a0] sm:$0xff]
        %v262 = vld [vmem:[%s182 + $0x1a8] sm:$0xff]
        %v263 = vld [vmem:[%s182 + $0x1b0] sm:$0xff]
        %v264 = vld [vmem:[%s182 + $0x1b8] sm:$0xff]
        %v265 = vld [vmem:[%s182 + $0x1c0] sm:$0xff]
        %v266 = vld [vmem:[%s182 + $0x1c8] sm:$0xff]
        %v267 = vld [vmem:[%s182 + $0x1d0] sm:$0xff]
        %v268 = vld [vmem:[%s182 + $0x1d8] sm:$0xff]
        %v269 = vld [vmem:[%s182 + $0x1e0] sm:$0xff]
        %v270 = vld [vmem:[%s182 + $0x1e8] sm:$0xff]
        %v271 = vld [vmem:[%s182 + $0x1f0] sm:$0xff]
        %v272 = vld [vmem:[%s182 + $0x1f8] sm:$0xff]
        %v273 = vld [vmem:[%s182 + $0x200] sm:$0xff]
        %v274 = vld [vmem:[%s182 + $0x208] sm:$0xff]
        %v275 = vld [vmem:[%s182 + $0x210] sm:$0xff]
        %v276 = vld [vmem:[%s182 + $0x218] sm:$0xff]
        %v277 = vld [vmem:[%s182 + $0x220] sm:$0xff]
        %v278 = vld [vmem:[%s182 + $0x228] sm:$0xff]
        %v279 = vld [vmem:[%s182 + $0x230] sm:$0xff]
        %v280 = vld [vmem:[%s182 + $0x238] sm:$0xff]
        %v281 = vld [vmem:[%s182 + $0x240] sm:$0xff]
        %v282 = vld [vmem:[%s182 + $0x248] sm:$0xff]
        %v283 = vld [vmem:[%s182 + $0x250] sm:$0xff]
        %v284 = vld [vmem:[%s182 + $0x258] sm:$0xff]
        %v285 = vld [vmem:[%s182 + $0x260] sm:$0xff]
        %v286 = vld [vmem:[%s182 + $0x268] sm:$0xff]
        %v287 = vld [vmem:[%s182 + $0x270] sm:$0xff]
        %v288 = vld [vmem:[%s182 + $0x278] sm:$0xff]
        %v289 = vld [vmem:[%s182 + $0x280] sm:$0xff]
        %v290 = vld [vmem:[%s182 + $0x288] sm:$0xff]
        %v291 = vld [vmem:[%s182 + $0x290] sm:$0xff]
        %v292 = vld [vmem:[%s182 + $0x298] sm:$0xff]
        %v293 = vld [vmem:[%s182 + $0x2a0] sm:$0xff]
        %v294 = vld [vmem:[%s182 + $0x2a8] sm:$0xff]
        %v295 = vld [vmem:[%s182 + $0x2b0] sm:$0xff]
        %v296 = vld [vmem:[%s182 + $0x2b8] sm:$0xff]
        %v297 = vld [vmem:[%s182 + $0x2c0] sm:$0xff]
        %v298 = vld [vmem:[%s182 + $0x2c8] sm:$0xff]
        %v299 = vld [vmem:[%s182 + $0x2d0] sm:$0xff]
        %v300 = vld [vmem:[%s182 + $0x2d8] sm:$0xff]
        %v301 = vld [vmem:[%s182 + $0x2e0] sm:$0xff]
        %v302 = vld [vmem:[%s182 + $0x2e8] sm:$0xff]
        %v303 = vld [vmem:[%s182 + $0x2f0] sm:$0xff]
        %v304 = vld [vmem:[%s182 + $0x2f8] sm:$0xff]
        %v305 = vld [vmem:[%s182 + $0x300] sm:$0xff]
        %v306 = vld [vmem:[%s182 + $0x308] sm:$0xff]
        %v307 = vld [vmem:[%s182 + $0x310] sm:$0xff]
        %v308 = vld [vmem:[%s182 + $0x318] sm:$0xff]
        %v309 = vld [vmem:[%s182 + $0x320] sm:$0xff]
        %v310 = vld [vmem:[%s182 + $0x328] sm:$0xff]
        %v311 = vld [vmem:[%s182 + $0x330] sm:$0xff]
        %v312 = vld [vmem:[%s182 + $0x338] sm:$0xff]
        %v313 = vld [vmem:[%s182 + $0x340] sm:$0xff]
        %v314 = vld [vmem:[%s182 + $0x348] sm:$0xff]
        %v315 = vld [vmem:[%s182 + $0x350] sm:$0xff]
        %v316 = vld [vmem:[%s182 + $0x358] sm:$0xff]
        %v317 = vld [vmem:[%s182 + $0x360] sm:$0xff]
        %v318 = vld [vmem:[%s182 + $0x368] sm:$0xff]
        %v319 = vld [vmem:[%s182 + $0x370] sm:$0xff]
        %v320 = vld [vmem:[%s182 + $0x378] sm:$0xff]
        %v321 = vld [vmem:[%s182 + $0x380] sm:$0xff]
        %v322 = vld [vmem:[%s182 + $0x388] sm:$0xff]
        %v323 = vld [vmem:[%s182 + $0x390] sm:$0xff]
        %v324 = vld [vmem:[%s182 + $0x398] sm:$0xff]
        %v325 = vld [vmem:[%s182 + $0x3a0] sm:$0xff]
        %v326 = vld [vmem:[%s182 + $0x3a8] sm:$0xff]
        %v327 = vld [vmem:[%s182 + $0x3b0] sm:$0xff]
        %v328 = vld [vmem:[%s182 + $0x3b8] sm:$0xff]
        %v329 = vld [vmem:[%s182 + $0x3c0] sm:$0xff]
        %v330 = vld [vmem:[%s182 + $0x3c8] sm:$0xff]
        %v331 = vld [vmem:[%s182 + $0x3d0] sm:$0xff]
        %v332 = vld [vmem:[%s182 + $0x3d8] sm:$0xff]
        %v333 = vld [vmem:[%s182 + $0x3e0] sm:$0xff]
        %v334 = vld [vmem:[%s182 + $0x3e8] sm:$0xff]
        %v335 = vld [vmem:[%s182 + $0x3f0] sm:$0xff]
        %v336 = vld [vmem:[%s182 + $0x3f8] sm:$0xff]
        %v337 = vld [vmem:[%s182 + $0x400] sm:$0xff]
        %v338 = vld [vmem:[%s182 + $0x408] sm:$0xff]
        %v339 = vld [vmem:[%s182 + $0x410] sm:$0xff]
        %v340 = vld [vmem:[%s182 + $0x418] sm:$0xff]
        %v341 = vld [vmem:[%s182 + $0x420] sm:$0xff]
        %v342 = vld [vmem:[%s182 + $0x428] sm:$0xff]
        %v343 = vld [vmem:[%s182 + $0x430] sm:$0xff]
        %v344 = vld [vmem:[%s182 + $0x438] sm:$0xff]
        %v345 = vld [vmem:[%s182 + $0x440] sm:$0xff]
        %v346 = vld [vmem:[%s182 + $0x448] sm:$0xff]
        %v347 = vld [vmem:[%s182 + $0x450] sm:$0xff]
        %v348 = vld [vmem:[%s182 + $0x458] sm:$0xff]
        %v349 = vld [vmem:[%s182 + $0x460] sm:$0xf]
        %v350 = vld [vmem:[%s182 + $0x468] sm:$0xf]
        %v351 = vld [vmem:[%s182 + $0x470] sm:$0xf]
        %v352 = vld [vmem:[%s182 + $0x478] sm:$0xf]
        %v353 = vld [vmem:[%s182 + $0x480] sm:$0xf]
        %v354 = vld [vmem:[%s182 + $0x488] sm:$0xf]
        %v355 = vld [vmem:[%s182 + $0x490] sm:$0xf]
        %v356 = vld [vmem:[%s182 + $0x498] sm:$0xf]
        %v357 = vld [vmem:[%s182 + $0x4a0] sm:$0xf]
        %v358 = vld [vmem:[%s182 + $0x4a8] sm:$0xf]
        %v359 = vld [vmem:[%s182 + $0x4b0] sm:$0xf]
        %v360 = vld [vmem:[%s182 + $0x4b8] sm:$0xf]
        %v361 = vld [vmem:[%s182 + $0x4c0] sm:$0xf]
        %v362 = vld [vmem:[%s182 + $0x4c8] sm:$0xf]
        %v363 = vld [vmem:[%s1] sm:$0xff]
        %365 = vset.pattern.permute.xlu0 0
        %366 = vperm.xlu0 %365, %v363
        %v367 = vpop.permute.xlu0 %366
        %vm369 = vcmask 687104
        %v371 = vsel %vm369, %v208, 0
        %vm373 = vcmask 1043456
        %v375 = vsel %vm373, %v349, 0
        %v378 = vsel %vm373, %v350, 0
        %v381 = vsel %vm373, %v351, 0
        %v384 = vsel %vm373, %v352, 0
        %v387 = vsel %vm373, %v353, 0
        %v390 = vsel %vm373, %v354, 0
        %v393 = vsel %vm373, %v355, 0
        %v396 = vsel %vm373, %v356, 0
        %v399 = vsel %vm373, %v357, 0
        %v402 = vsel %vm373, %v358, 0
        %v405 = vsel %vm373, %v359, 0
        %v408 = vsel %vm373, %v360, 0
        %v411 = vsel %vm373, %v361, 0
        %v414 = vsel %vm373, %v362, 0
        %416 = vmatpush.msra.mxu0 0.0
        %417 = vmatpush.msra.mxu0 0.0
        %418 = vmatpush.msra.mxu0 0.0
        %419 = vmatpush.msra.mxu0 0.0
        %420 = vmatpush.msra.mxu0 0.0
        %421 = vmatpush.msra.mxu0 %v375
        %422 = vmatpush.msra.mxu0 %v335
        %423 = vmatpush.msra.mxu0 %v321
        %424 = vmatpush.msra.mxu0 %v307
        %425 = vmatpush.msra.mxu0 %v293
        %426 = vmatpush.msra.mxu0 %v279
        %427 = vmatpush.msra.mxu0 %v265
        %428 = vmatpush.msra.mxu0 %v251
        %429 = vmatpush.msra.mxu0 %v237
        %430 = vmatpush.msra.mxu0 %v223
        %431 = vmatpush.msra.mxu0 %v209
        %432 = vmatmul.f32.gmra.mxu0 %v371
        %v433 = vpop.f32.mrf.mxu0
        %v434 = vadd.f32 %v367, %v433
        %435 = vdwg.mxu0
        %436 = vmatpush.msra.mxu0 0.0
        %437 = vmatpush.msra.mxu0 0.0
        %438 = vmatpush.msra.mxu0 0.0
        %439 = vmatpush.msra.mxu0 0.0
        %440 = vmatpush.msra.mxu0 0.0
        %441 = vmatpush.msra.mxu0 %v378
        %442 = vmatpush.msra.mxu0 %v336
        %443 = vmatpush.msra.mxu0 %v322
        %444 = vmatpush.msra.mxu0 %v308
        %445 = vmatpush.msra.mxu0 %v294
        %446 = vmatpush.msra.mxu0 %v280
        %447 = vmatpush.msra.mxu0 %v266
        %448 = vmatpush.msra.mxu0 %v252
        %449 = vmatpush.msra.mxu0 %v238
        %450 = vmatpush.msra.mxu0 %v224
        %451 = vmatpush.msra.mxu0 %v210
        %452 = vmatmul.f32.gmra.mxu0 %v371
        %v453 = vpop.f32.mrf.mxu0
        %v454 = vadd.f32 %v367, %v453
        %455 = vdwg.mxu0
        %456 = vmatpush.msra.mxu0 0.0
        %457 = vmatpush.msra.mxu0 0.0
        %458 = vmatpush.msra.mxu0 0.0
        %459 = vmatpush.msra.mxu0 0.0
        %460 = vmatpush.msra.mxu0 0.0
        %461 = vmatpush.msra.mxu0 %v381
        %462 = vmatpush.msra.mxu0 %v337
        %463 = vmatpush.msra.mxu0 %v323
        %464 = vmatpush.msra.mxu0 %v309
        %465 = vmatpush.msra.mxu0 %v295
        %466 = vmatpush.msra.mxu0 %v281
        %467 = vmatpush.msra.mxu0 %v267
        %468 = vmatpush.msra.mxu0 %v253
        %469 = vmatpush.msra.mxu0 %v239
        %470 = vmatpush.msra.mxu0 %v225
        %471 = vmatpush.msra.mxu0 %v211
        %472 = vmatmul.f32.gmra.mxu0 %v371
        %v473 = vpop.f32.mrf.mxu0
        %v474 = vadd.f32 %v367, %v473
        %475 = vdwg.mxu0
        %476 = vmatpush.msra.mxu0 0.0
        %477 = vmatpush.msra.mxu0 0.0
        %478 = vmatpush.msra.mxu0 0.0
        %479 = vmatpush.msra.mxu0 0.0
        %480 = vmatpush.msra.mxu0 0.0
        %481 = vmatpush.msra.mxu0 %v384
        %482 = vmatpush.msra.mxu0 %v338
        %483 = vmatpush.msra.mxu0 %v324
        %484 = vmatpush.msra.mxu0 %v310
        %485 = vmatpush.msra.mxu0 %v296
        %486 = vmatpush.msra.mxu0 %v282
        %487 = vmatpush.msra.mxu0 %v268
        %488 = vmatpush.msra.mxu0 %v254
        %489 = vmatpush.msra.mxu0 %v240
        %490 = vmatpush.msra.mxu0 %v226
        %491 = vmatpush.msra.mxu0 %v212
        %492 = vmatmul.f32.gmra.mxu0 %v371
        %v493 = vpop.f32.mrf.mxu0
        %v494 = vadd.f32 %v367, %v493
        %495 = vdwg.mxu0
        %496 = vmatpush.msra.mxu0 0.0
        %497 = vmatpush.msra.mxu0 0.0
        %498 = vmatpush.msra.mxu0 0.0
        %499 = vmatpush.msra.mxu0 0.0
        %500 = vmatpush.msra.mxu0 0.0
        %501 = vmatpush.msra.mxu0 %v387
        %502 = vmatpush.msra.mxu0 %v339
        %503 = vmatpush.msra.mxu0 %v325
        %504 = vmatpush.msra.mxu0 %v311
        %505 = vmatpush.msra.mxu0 %v297
        %506 = vmatpush.msra.mxu0 %v283
        %507 = vmatpush.msra.mxu0 %v269
        %508 = vmatpush.msra.mxu0 %v255
        %509 = vmatpush.msra.mxu0 %v241
        %510 = vmatpush.msra.mxu0 %v227
        %511 = vmatpush.msra.mxu0 %v213
        %512 = vmatmul.f32.gmra.mxu0 %v371
        %v513 = vpop.f32.mrf.mxu0
        %v514 = vadd.f32 %v367, %v513
        %515 = vdwg.mxu0
        %516 = vmatpush.msra.mxu0 0.0
        %517 = vmatpush.msra.mxu0 0.0
        %518 = vmatpush.msra.mxu0 0.0
        %519 = vmatpush.msra.mxu0 0.0
        %520 = vmatpush.msra.mxu0 0.0
        %521 = vmatpush.msra.mxu0 %v390
        %522 = vmatpush.msra.mxu0 %v340
        %523 = vmatpush.msra.mxu0 %v326
        %524 = vmatpush.msra.mxu0 %v312
        %525 = vmatpush.msra.mxu0 %v298
        %526 = vmatpush.msra.mxu0 %v284
        %527 = vmatpush.msra.mxu0 %v270
        %528 = vmatpush.msra.mxu0 %v256
        %529 = vmatpush.msra.mxu0 %v242
        %530 = vmatpush.msra.mxu0 %v228
        %531 = vmatpush.msra.mxu0 %v214
        %532 = vmatmul.f32.gmra.mxu0 %v371
        %v533 = vpop.f32.mrf.mxu0
        %v534 = vadd.f32 %v367, %v533
        %535 = vdwg.mxu0
        %536 = vmatpush.msra.mxu0 0.0
        %537 = vmatpush.msra.mxu0 0.0
        %538 = vmatpush.msra.mxu0 0.0
        %539 = vmatpush.msra.mxu0 0.0
        %540 = vmatpush.msra.mxu0 0.0
        %541 = vmatpush.msra.mxu0 %v393
        %542 = vmatpush.msra.mxu0 %v341
        %543 = vmatpush.msra.mxu0 %v327
        %544 = vmatpush.msra.mxu0 %v313
        %545 = vmatpush.msra.mxu0 %v299
        %546 = vmatpush.msra.mxu0 %v285
        %547 = vmatpush.msra.mxu0 %v271
        %548 = vmatpush.msra.mxu0 %v257
        %549 = vmatpush.msra.mxu0 %v243
        %550 = vmatpush.msra.mxu0 %v229
        %551 = vmatpush.msra.mxu0 %v215
        %552 = vmatmul.f32.gmra.mxu0 %v371
        %v553 = vpop.f32.mrf.mxu0
        %v554 = vadd.f32 %v367, %v553
        %555 = vdwg.mxu0
        %556 = vmatpush.msra.mxu0 0.0
        %557 = vmatpush.msra.mxu0 0.0
        %558 = vmatpush.msra.mxu0 0.0
        %559 = vmatpush.msra.mxu0 0.0
        %560 = vmatpush.msra.mxu0 0.0
        %561 = vmatpush.msra.mxu0 %v396
        %562 = vmatpush.msra.mxu0 %v342
        %563 = vmatpush.msra.mxu0 %v328
        %564 = vmatpush.msra.mxu0 %v314
        %565 = vmatpush.msra.mxu0 %v300
        %566 = vmatpush.msra.mxu0 %v286
        %567 = vmatpush.msra.mxu0 %v272
        %568 = vmatpush.msra.mxu0 %v258
        %569 = vmatpush.msra.mxu0 %v244
        %570 = vmatpush.msra.mxu0 %v230
        %571 = vmatpush.msra.mxu0 %v216
        %572 = vmatmul.f32.gmra.mxu0 %v371
        %v573 = vpop.f32.mrf.mxu0
        %v574 = vadd.f32 %v367, %v573
        %575 = vdwg.mxu0
        %576 = vmatpush.msra.mxu0 0.0
        %577 = vmatpush.msra.mxu0 0.0
        %578 = vmatpush.msra.mxu0 0.0
        %579 = vmatpush.msra.mxu0 0.0
        %580 = vmatpush.msra.mxu0 0.0
        %581 = vmatpush.msra.mxu0 %v399
        %582 = vmatpush.msra.mxu0 %v343
        %583 = vmatpush.msra.mxu0 %v329
        %584 = vmatpush.msra.mxu0 %v315
        %585 = vmatpush.msra.mxu0 %v301
        %586 = vmatpush.msra.mxu0 %v287
        %587 = vmatpush.msra.mxu0 %v273
        %588 = vmatpush.msra.mxu0 %v259
        %589 = vmatpush.msra.mxu0 %v245
        %590 = vmatpush.msra.mxu0 %v231
        %591 = vmatpush.msra.mxu0 %v217
        %592 = vmatmul.f32.gmra.mxu0 %v371
        %v593 = vpop.f32.mrf.mxu0
        %v594 = vadd.f32 %v367, %v593
        %595 = vdwg.mxu0
        %596 = vmatpush.msra.mxu0 0.0
        %597 = vmatpush.msra.mxu0 0.0
        %598 = vmatpush.msra.mxu0 0.0
        %599 = vmatpush.msra.mxu0 0.0
        %600 = vmatpush.msra.mxu0 0.0
        %601 = vmatpush.msra.mxu0 %v402
        %602 = vmatpush.msra.mxu0 %v344
        %603 = vmatpush.msra.mxu0 %v330
        %604 = vmatpush.msra.mxu0 %v316
        %605 = vmatpush.msra.mxu0 %v302
        %606 = vmatpush.msra.mxu0 %v288
        %607 = vmatpush.msra.mxu0 %v274
        %608 = vmatpush.msra.mxu0 %v260
        %609 = vmatpush.msra.mxu0 %v246
        %610 = vmatpush.msra.mxu0 %v232
        %611 = vmatpush.msra.mxu0 %v218
        %612 = vmatmul.f32.gmra.mxu0 %v371
        %v613 = vpop.f32.mrf.mxu0
        %v614 = vadd.f32 %v367, %v613
        %615 = vdwg.mxu0
        %616 = vmatpush.msra.mxu0 0.0
        %617 = vmatpush.msra.mxu0 0.0
        %618 = vmatpush.msra.mxu0 0.0
        %619 = vmatpush.msra.mxu0 0.0
        %620 = vmatpush.msra.mxu0 0.0
        %621 = vmatpush.msra.mxu0 %v405
        %622 = vmatpush.msra.mxu0 %v345
        %623 = vmatpush.msra.mxu0 %v331
        %624 = vmatpush.msra.mxu0 %v317
        %625 = vmatpush.msra.mxu0 %v303
        %626 = vmatpush.msra.mxu0 %v289
        %627 = vmatpush.msra.mxu0 %v275
        %628 = vmatpush.msra.mxu0 %v261
        %629 = vmatpush.msra.mxu0 %v247
        %630 = vmatpush.msra.mxu0 %v233
        %631 = vmatpush.msra.mxu0 %v219
        %632 = vmatmul.f32.gmra.mxu0 %v371
        %v633 = vpop.f32.mrf.mxu0
        %v634 = vadd.f32 %v367, %v633
        %635 = vdwg.mxu0
        %636 = vmatpush.msra.mxu0 0.0
        %637 = vmatpush.msra.mxu0 0.0
        %638 = vmatpush.msra.mxu0 0.0
        %639 = vmatpush.msra.mxu0 0.0
        %640 = vmatpush.msra.mxu0 0.0
        %641 = vmatpush.msra.mxu0 %v408
        %642 = vmatpush.msra.mxu0 %v346
        %643 = vmatpush.msra.mxu0 %v332
        %644 = vmatpush.msra.mxu0 %v318
        %645 = vmatpush.msra.mxu0 %v304
        %646 = vmatpush.msra.mxu0 %v290
        %647 = vmatpush.msra.mxu0 %v276
        %648 = vmatpush.msra.mxu0 %v262
        %649 = vmatpush.msra.mxu0 %v248
        %650 = vmatpush.msra.mxu0 %v234
        %651 = vmatpush.msra.mxu0 %v220
        %652 = vmatmul.f32.gmra.mxu0 %v371
        %v653 = vpop.f32.mrf.mxu0
        %v654 = vadd.f32 %v367, %v653
        %655 = vdwg.mxu0
        %656 = vmatpush.msra.mxu0 0.0
        %657 = vmatpush.msra.mxu0 0.0
        %658 = vmatpush.msra.mxu0 0.0
        %659 = vmatpush.msra.mxu0 0.0
        %660 = vmatpush.msra.mxu0 0.0
        %661 = vmatpush.msra.mxu0 %v411
        %662 = vmatpush.msra.mxu0 %v347
        %663 = vmatpush.msra.mxu0 %v333
        %664 = vmatpush.msra.mxu0 %v319
        %665 = vmatpush.msra.mxu0 %v305
        %666 = vmatpush.msra.mxu0 %v291
        %667 = vmatpush.msra.mxu0 %v277
        %668 = vmatpush.msra.mxu0 %v263
        %669 = vmatpush.msra.mxu0 %v249
        %670 = vmatpush.msra.mxu0 %v235
        %671 = vmatpush.msra.mxu0 %v221
        %672 = vmatmul.f32.gmra.mxu0 %v371
        %v673 = vpop.f32.mrf.mxu0
        %v674 = vadd.f32 %v367, %v673
        %675 = vdwg.mxu0
        %676 = vmatpush.msra.mxu0 0.0
        %677 = vmatpush.msra.mxu0 0.0
        %678 = vmatpush.msra.mxu0 0.0
        %679 = vmatpush.msra.mxu0 0.0
        %680 = vmatpush.msra.mxu0 0.0
        %681 = vmatpush.msra.mxu0 %v414
        %682 = vmatpush.msra.mxu0 %v348
        %683 = vmatpush.msra.mxu0 %v334
        %684 = vmatpush.msra.mxu0 %v320
        %685 = vmatpush.msra.mxu0 %v306
        %686 = vmatpush.msra.mxu0 %v292
        %687 = vmatpush.msra.mxu0 %v278
        %688 = vmatpush.msra.mxu0 %v264
        %689 = vmatpush.msra.mxu0 %v250
        %690 = vmatpush.msra.mxu0 %v236
        %691 = vmatpush.msra.mxu0 %v222
        %692 = vmatmul.f32.gmra.mxu0 %v371
        %v693 = vpop.f32.mrf.mxu0
        %v694 = vadd.f32 %v367, %v693
        %695 = vdwg.mxu0
        %v696 = vtanh.pop %v434
        %v697 = vtanh.pop %v454
        %v698 = vtanh.pop %v474
        %v699 = vtanh.pop %v494
        %v700 = vtanh.pop %v514
        %v701 = vtanh.pop %v534
        %v702 = vtanh.pop %v554
        %v703 = vtanh.pop %v574
        %v704 = vtanh.pop %v594
        %v705 = vtanh.pop %v614
        %v706 = vtanh.pop %v634
        %v707 = vtanh.pop %v654
        %v708 = vtanh.pop %v674
        %v709 = vtanh.pop %v694
        %710 = vst [vmem:[%s205] sm:$0xff] %v696
        %711 = vst [vmem:[%s205 + $0x8] sm:$0xff] %v697
        %712 = vst [vmem:[%s205 + $0x10] sm:$0xff] %v698
        %713 = vst [vmem:[%s205 + $0x18] sm:$0xff] %v699
        %714 = vst [vmem:[%s205 + $0x20] sm:$0xff] %v700
        %715 = vst [vmem:[%s205 + $0x28] sm:$0xff] %v701
        %716 = vst [vmem:[%s205 + $0x30] sm:$0xff] %v702
        %717 = vst [vmem:[%s205 + $0x38] sm:$0xff] %v703
        %718 = vst [vmem:[%s205 + $0x40] sm:$0xff] %v704
        %719 = vst [vmem:[%s205 + $0x48] sm:$0xff] %v705
        %720 = vst [vmem:[%s205 + $0x50] sm:$0xff] %v706
        %721 = vst [vmem:[%s205 + $0x58] sm:$0xff] %v707
        %722 = vst [vmem:[%s205 + $0x60] sm:$0xff] %v708
        %723 = vst [vmem:[%s205 + $0x68] sm:$0xff] %v709
        %s724 = sand.u32 %s97, 1
        %s725 = scalar_lea.sflag [#allocation4], %s724
        %s726 = sand.u32 %s97, 1
        %s727 = smul.addr %s726, 112
        %s728 = scalar_lea.vmem [#allocation7], %s727
        // Predicated region
        $region41: #{tpu_custom_call.1} parent=31 // pred_check
          %p729 = pneg %p107
        $region42: #{tpu_custom_call.1} parent=31 // pred_check_branch
          %731 = sbr.rel (%p729) target = $region44
        $region43: #{tpu_custom_call.1} parent=31 // pred_region
          %s732 = smul.u32 14, %s21
          %734 = vsyncadd %s725, 0
          %s735 = smul.addr %s732, 8
          %s736 = scalar_lea.hbm %s3, %s735
          %s738 = sshll.u32 %s728, 4
          %s739 = int_to_ptr.vmem [resolvable:$true] %s738
          %s740 = sshll.u32 %s736, 4
          %s741 = int_to_ptr.hbm [resolvable:$true] %s740
          %743 = dma.vmem_to_hbm [thread:$0]  %s739, 1792, %s741, %s725
        $region44: #{tpu_custom_call.1} parent=31 // pred_fallthru
          _
      $region32: #{tpu_custom_call.1} parent=5 // pred_fallthru
        _
      %p744 = scmp.le.s32.totalorder 2, %s16
      // Predicated region
      $region45: #{tpu_custom_call.1} parent=5 // pred_check
        %p745 = pneg %p744
      $region46: #{tpu_custom_call.1} parent=5 // pred_check_branch
        %747 = sbr.rel (%p745) target = $region48
      $region47: #{tpu_custom_call.1} parent=5 // pred_region
        %s748 = ssub.s32 %s16, 2
        // Predicated region
        $region49: #{tpu_custom_call.1} parent=47 // pred_check
          %p749 = pneg %p113
        $region50: #{tpu_custom_call.1} parent=47 // pred_check_branch
          %751 = sbr.rel (%p749) target = $region52
        $region51: #{tpu_custom_call.1} parent=47 // pred_region
          %s752 = sand.u32 %s98, 1
          %s753 = scalar_lea.sflag [#allocation4], %s752
          %s754 = sand.u32 %s98, 1
          %s755 = smul.addr %s754, 112
          %s756 = scalar_lea.vmem [#allocation7], %s755
          %758 = dma.done %s753, 1792
        $region52: #{tpu_custom_call.1} parent=47 // pred_fallthru
          _
      $region48: #{tpu_custom_call.1} parent=5 // pred_fallthru
        _
    $region6: #{tpu_custom_call.1} parent=1 // loop_footer
      %s20 = sadd.s32 1, %s16
    $region7: #{tpu_custom_call.1} parent=1 // loop_footer_branch
      %15 = sbr.rel target = $region3
    $region8: #{tpu_custom_call.1} parent=1 // loop_exit
      _
    %759 = vsyncpa [#allocation3], 1
    %s760 = scalar_lea.sflag [#allocation3], 1
    %761 = vsyncpa %s760, 1
    %762 = vsyncpa [#allocation6], 1
    %s763 = scalar_lea.sflag [#allocation6], 1
    %764 = vsyncpa %s763, 1
    %765 = vsyncpa [#allocation4], 1
    %s766 = scalar_lea.sflag [#allocation4], 1
    %767 = vsyncpa %s766, 1

</llo_original>
